<compile_context>
chip_gen: v7x
topology: tpu7x:2x2x1
jax: 0.10.0
libtpu: 0.0.40
codegen_flags: <defaults>
</compile_context>

<pallas_src>
import functools

import jax
import jax.numpy as jnp
from jax.experimental import pallas as pl
from jax.experimental.pallas import tpu as pltpu


NEGATIVE_SLOPE = 0.2          # LeakyReLU slope assumed for make_mlp hidden activations
_LANE = 128                   # TPU lane width
_SUBLANE = {4: 8, 2: 16, 1: 32}
_MAX_BATCH_TILE = 4096        # upper cap on the batch tile (amortizes per-step overhead)


def _round_up(x, m):
    return (x + m - 1) // m * m


def _tile_bytes(rows, cols, itemsize):
    """VMEM footprint of one (rows, cols) tile with (sublane, lane) padding."""
    sub = _SUBLANE.get(itemsize, 8)
    return _round_up(max(rows, 1), sub) * _round_up(max(cols, 1), _LANE) * itemsize


def _mlp_kernel(n_layers, compute_dtype, *refs):
    """Full MLP forward for one batch tile (all operands resident in VMEM).

    refs layout: (x_ref, w0, b0, w1, b1, ..., w_{L-1}, b_{L-1}, o_ref)
    Hidden weights/biases are lane-padded (multiples of 128 output columns);
    the final layer keeps a single output column, so o_ref is (TB, 1).
    """
    x_ref = refs[0]
    o_ref = refs[-1]
    param_refs = refs[1:-1]

    # Cast the natively-typed input tile on the VPU (hidden under the DMA).
    h = x_ref[...].astype(compute_dtype)
    for i in range(n_layers):
        w = param_refs[2 * i][...]
        b = param_refs[2 * i + 1][...].astype(jnp.float32)   # (1, out) broadcast
        z = jnp.dot(h, w, preferred_element_type=jnp.float32) + b
        if i < n_layers - 1:                                  # hidden: LeakyReLU(0.2)
            z = jnp.where(z > 0, z, NEGATIVE_SLOPE * z)
            h = z.astype(compute_dtype)                       # keep MXU inputs narrow
        else:
            h = z                                             # final logit stays f32
    o_ref[...] = h.astype(o_ref.dtype)


def init_discriminator_params(key, sample_length, hidden_dims, dtype=jnp.float32):
    """PyTorch-Linear-style init: U(-1/sqrt(fan_in), 1/sqrt(fan_in)).

    Hidden widths are zero-padded up to multiples of 128 lanes HERE (once), so
    every weight tile and activation inside the kernel is lane-dense; padded
    rows/columns are zero and numerically inert through Linear+LeakyReLU, so
    the forward result is identical to the unpadded MLP.  Weights are stored
    [in, out] (transposed vs. torch) so each Linear is a plain MXU matmul.
    Pass dtype=jnp.bfloat16 for half-width weight residency (f32 accumulate).
    """
    logical = [2 * sample_length] + list(hidden_dims) + [1]
    padded = [logical[0]] + [_round_up(h, _LANE) for h in hidden_dims] + [1]
    params = []
    for i in range(len(logical) - 1):
        fan_in, fan_out = logical[i], logical[i + 1]
        in_p, out_p = padded[i], padded[i + 1]
        key, kw, kb = jax.random.split(key, 3)
        bound = 1.0 / float(fan_in) ** 0.5
        w = jax.random.uniform(kw, (fan_in, fan_out), jnp.float32, -bound, bound)
        b = jax.random.uniform(kb, (1, fan_out), jnp.float32, -bound, bound)
        w = jnp.pad(w, ((0, in_p - fan_in), (0, out_p - fan_out)))
        b = jnp.pad(b, ((0, 0), (0, out_p - fan_out)))
        params.append((w.astype(dtype), b.astype(dtype)))
    return params


def discriminator_forward(x, params, *, max_batch_tile=_MAX_BATCH_TILE):
    """JAX/Pallas equivalent of Discriminator.forward.

    x: any shape (B, ...) whose trailing dims flatten to 2*sample_length.
    returns: (B, 1, 1) f32 logits, matching the PyTorch output shape.
    """
    B = x.shape[0]
    x2d = x.reshape(B, -1)              # flatten(start_dim=1); keep NATIVE dtype
    feat = x2d.shape[1]
    n_layers = len(params)
    compute_dtype = params[0][0].dtype
    assert params[0][0].shape[0] == feat, (params[0][0].shape, feat)

    # ---- generation-aware VMEM budget & batch-tile selection ------------------
    try:
        vmem_cap = int(pltpu.get_tpu_info().vmem_capacity_bytes)
    except Exception:
        vmem_cap = 64 << 20             # conservative (v7x-sized) fallback
    budget = int(vmem_cap * 0.70)       # leave headroom for Mosaic internal scratch

    # per-row VMEM cost (bytes) at a given batch tile:
    per_row = 2 * _round_up(feat, _LANE) * x2d.dtype.itemsize   # double-buffered x
    per_row += 2 * _LANE * 4                                    # double-buffered (.,1) out
    for w, _ in params:                                         # f32 activations (1x)
        per_row += _round_up(w.shape[1], _LANE) * 4
    # fixed (grid-invariant) param cost; counted at 2 buffers here to be safe.
    fixed = 2 * sum(_tile_bytes(w.shape[0], w.shape[1], w.dtype.itemsize)
                    + _tile_bytes(b.shape[0], b.shape[1], b.dtype.itemsize)
                    for w, b in params)

    rows_fit = max(8, (budget - fixed - (2 << 20)) // max(per_row, 1))
    tb_cap = max(8, (min(max_batch_tile, int(rows_fit)) // 8) * 8)
    if B <= tb_cap:
        TB = B
        # Give v7x's second TensorCore a tile when the batch is big enough that
        # the extra grid step is free on single-TC parts.
        if B >= 64 and B % 16 == 0:
            TB = B // 2
    else:
        TB = tb_cap                     # multiple of 8 when tiled
    grid = (pl.cdiv(B, TB),)

    flat_params = [p for wb in params for p in wb]

    def _in_specs(use_buffered):
        specs = [pl.BlockSpec((TB, feat), lambda i: (i, 0))]
        extra = {"pipeline_mode": pl.Buffered(1)} if use_buffered else {}
        for w, b in params:
            # index_map -> (0, 0): weights/biases stay VMEM-resident across tiles.
            specs.append(pl.BlockSpec(w.shape, lambda i: (0, 0), **extra))
            specs.append(pl.BlockSpec(b.shape, lambda i: (0, 0), **extra))
        return specs

    def _vmem_limit(use_buffered):
        bufs = 1 if use_buffered else 2
        est = 0
        for w, b in params:                                     # resident params
            est += bufs * (_tile_bytes(w.shape[0], w.shape[1], w.dtype.itemsize)
                           + _tile_bytes(b.shape[0], b.shape[1], b.dtype.itemsize))
        est += 2 * _tile_bytes(TB, feat, x2d.dtype.itemsize)    # double-buffered x
        est += 2 * _tile_bytes(TB, 1, 4)                        # double-buffered out
        for w, _ in params:                                     # f32 activations (1x)
            est += _tile_bytes(TB, w.shape[1], 4)
        return int(min(budget, max(32 << 20, est + (4 << 20))))

    def _run(use_buffered):
        return pl.pallas_call(
            functools.partial(_mlp_kernel, n_layers, compute_dtype),
            out_shape=jax.ShapeDtypeStruct((B, 1), jnp.float32),
            grid=grid,
            in_specs=_in_specs(use_buffered),
            out_specs=pl.BlockSpec((TB, 1), lambda i: (i, 0)),
            compiler_params=pltpu.CompilerParams(
                dimension_semantics=("parallel",),   # shards batch tiles across TCs
                vmem_limit_bytes=_vmem_limit(use_buffered),
            ),
        )(x2d, *flat_params)

    try:
        out = _run(True)     # single-buffered, grid-invariant weights
    except Exception:
        out = _run(False)    # fall back to default double buffering

    # PyTorch mlp emits (B, 1, 1); reshape is glue.
    return out.reshape(B, 1, 1)


def _reference_forward(x, params):
    """Pure-JAX reference for correctness checking."""
    B = x.shape[0]
    h = x.reshape(B, -1).astype(jnp.float32)
    n_layers = len(params)
    for i, (w, b) in enumerate(params):
        h = jnp.dot(h, w.astype(jnp.float32),
                    precision=jax.lax.Precision.HIGHEST) + b.astype(jnp.float32)
        if i < n_layers - 1:
            h = jnp.where(h > 0, h, NEGATIVE_SLOPE * h)
    return h.reshape(B, 1, 1)


if __name__ == "__main__":
    # Small shapes consistent with the module: sample_length=8 -> input flattens
    # to 2*sample_length=16 features; hidden_dims=[32, 32]; batch=2.
    sample_length = 8
    hidden_dims = [32, 32]
    batch = 2

    key = jax.random.PRNGKey(0)
    key, kx = jax.random.split(key)
    # Input shaped (B, 2, sample_length) so flatten(start_dim=1) gives 2*sample_length.
    x = jax.random.normal(kx, (batch, 2, sample_length), jnp.float32)

    params = init_discriminator_params(key, sample_length, hidden_dims)

    logit = discriminator_forward(x, params)
    logit = jax.block_until_ready(logit)

    ref = _reference_forward(x, params)
    assert logit.shape == (batch, 1, 1), logit.shape
    assert jnp.allclose(logit, ref, atol=1e-5, rtol=1e-5), (logit, ref)

    print("KERNEL_OK")
</pallas_src>

<mosaic_0001>
module attributes {stable_mosaic.version = 11 : i64} {
  func.func @_mlp_kernel(%arg0: i32, %arg1: memref<2x16xf32, #tpu.memory_space<vmem>>, %arg2: memref<16x128xf32, #tpu.memory_space<vmem>>, %arg3: memref<1x128xf32, #tpu.memory_space<vmem>>, %arg4: memref<128x128xf32, #tpu.memory_space<vmem>>, %arg5: memref<1x128xf32, #tpu.memory_space<vmem>>, %arg6: memref<128x1xf32, #tpu.memory_space<vmem>>, %arg7: memref<1x1xf32, #tpu.memory_space<vmem>>, %arg8: memref<2x1xf32, #tpu.memory_space<vmem>>) attributes {dimension_semantics = [#tpu.dimension_semantics<parallel>], iteration_bounds = array<i64: 1>, scalar_prefetch = 0 : i64, scratch_operands = 0 : i64, tpu.core_type = #tpu.core_type<tc>, window_params = [{transform_indices = @transform_0, window_bounds = array<i64: 2, 16>}, {pipeline_mode = #tpu.pipeline_mode<synchronous>, transform_indices = @transform_1, window_bounds = array<i64: 16, 128>}, {pipeline_mode = #tpu.pipeline_mode<synchronous>, transform_indices = @transform_2, window_bounds = array<i64: 1, 128>}, {pipeline_mode = #tpu.pipeline_mode<synchronous>, transform_indices = @transform_3, window_bounds = array<i64: 128, 128>}, {pipeline_mode = #tpu.pipeline_mode<synchronous>, transform_indices = @transform_4, window_bounds = array<i64: 1, 128>}, {pipeline_mode = #tpu.pipeline_mode<synchronous>, transform_indices = @transform_5, window_bounds = array<i64: 128, 1>}, {pipeline_mode = #tpu.pipeline_mode<synchronous>, transform_indices = @transform_6, window_bounds = array<i64: 1, 1>}, {transform_indices = @transform_7, window_bounds = array<i64: 2, 1>}]} {
    %c0 = arith.constant 0 : index
    %c0_0 = arith.constant 0 : index
    %0 = vector.load %arg1[%c0, %c0_0] : memref<2x16xf32, #tpu.memory_space<vmem>>, vector<2x16xf32>
    %c0_1 = arith.constant 0 : index
    %c0_2 = arith.constant 0 : index
    %1 = vector.load %arg2[%c0_1, %c0_2] : memref<16x128xf32, #tpu.memory_space<vmem>>, vector<16x128xf32>
    %c0_3 = arith.constant 0 : index
    %c0_4 = arith.constant 0 : index
    %2 = vector.load %arg3[%c0_3, %c0_4] : memref<1x128xf32, #tpu.memory_space<vmem>>, vector<1x128xf32>
    %cst = arith.constant dense<0.000000e+00> : vector<2x128xf32>
    %3 = tpu.matmul %0, %1, %cst {dimension_numbers = #tpu.dot_dimension_numbers<[1], [0], [0], [1], [0, 0, 1, 1], [], []>} : vector<2x16xf32>, vector<16x128xf32>, vector<2x128xf32> -> vector<2x128xf32>
    %4 = vector.broadcast %2 : vector<1x128xf32> to vector<2x128xf32>
    %5 = arith.addf %3, %4 : vector<2x128xf32>
    %cst_5 = arith.constant 0.000000e+00 : f32
    %6 = vector.broadcast %cst_5 : f32 to vector<2x128xf32>
    %7 = arith.cmpf ogt, %5, %6 : vector<2x128xf32>
    %cst_6 = arith.constant 2.000000e-01 : f32
    %8 = vector.broadcast %cst_6 : f32 to vector<2x128xf32>
    %9 = arith.mulf %8, %5 : vector<2x128xf32>
    %10 = arith.select %7, %5, %9 : vector<2x128xi1>, vector<2x128xf32>
    %c0_7 = arith.constant 0 : index
    %c0_8 = arith.constant 0 : index
    %11 = vector.load %arg4[%c0_7, %c0_8] : memref<128x128xf32, #tpu.memory_space<vmem>>, vector<128x128xf32>
    %c0_9 = arith.constant 0 : index
    %c0_10 = arith.constant 0 : index
    %12 = vector.load %arg5[%c0_9, %c0_10] : memref<1x128xf32, #tpu.memory_space<vmem>>, vector<1x128xf32>
    %cst_11 = arith.constant dense<0.000000e+00> : vector<2x128xf32>
    %13 = tpu.matmul %10, %11, %cst_11 {dimension_numbers = #tpu.dot_dimension_numbers<[1], [0], [0], [1], [0, 0, 1, 1], [], []>} : vector<2x128xf32>, vector<128x128xf32>, vector<2x128xf32> -> vector<2x128xf32>
    %14 = vector.broadcast %12 : vector<1x128xf32> to vector<2x128xf32>
    %15 = arith.addf %13, %14 : vector<2x128xf32>
    %cst_12 = arith.constant 0.000000e+00 : f32
    %16 = vector.broadcast %cst_12 : f32 to vector<2x128xf32>
    %17 = arith.cmpf ogt, %15, %16 : vector<2x128xf32>
    %cst_13 = arith.constant 2.000000e-01 : f32
    %18 = vector.broadcast %cst_13 : f32 to vector<2x128xf32>
    %19 = arith.mulf %18, %15 : vector<2x128xf32>
    %20 = arith.select %17, %15, %19 : vector<2x128xi1>, vector<2x128xf32>
    %c0_14 = arith.constant 0 : index
    %c0_15 = arith.constant 0 : index
    %21 = vector.load %arg6[%c0_14, %c0_15] : memref<128x1xf32, #tpu.memory_space<vmem>>, vector<128x1xf32>
    %c0_16 = arith.constant 0 : index
    %c0_17 = arith.constant 0 : index
    %22 = vector.load %arg7[%c0_16, %c0_17] : memref<1x1xf32, #tpu.memory_space<vmem>>, vector<1x1xf32>
    %cst_18 = arith.constant dense<0.000000e+00> : vector<2x1xf32>
    %23 = tpu.matmul %20, %21, %cst_18 {dimension_numbers = #tpu.dot_dimension_numbers<[1], [0], [0], [1], [0, 0, 1, 1], [], []>} : vector<2x128xf32>, vector<128x1xf32>, vector<2x1xf32> -> vector<2x1xf32>
    %24 = vector.broadcast %22 : vector<1x1xf32> to vector<2x1xf32>
    %25 = arith.addf %23, %24 : vector<2x1xf32>
    %c0_19 = arith.constant 0 : index
    %c0_20 = arith.constant 0 : index
    %26 = vector.load %arg8[%c0_19, %c0_20] : memref<2x1xf32, #tpu.memory_space<vmem>>, vector<2x1xf32>
    tpu.vector_store %arg8[%c0_19, %c0_20], %25 {strides = array<i32>} : memref<2x1xf32, #tpu.memory_space<vmem>>, vector<2x1xf32>,
    return
  }
  func.func @transform_0(%arg0: i32) -> (i32, i32) {
    %c0_i32 = arith.constant 0 : i32
    %c0_i32_0 = arith.constant 0 : i32
    return %arg0, %c0_i32 : i32, i32
  }
  func.func @transform_1(%arg0: i32) -> (i32, i32) {
    %c0_i32 = arith.constant 0 : i32
    %c0_i32_0 = arith.constant 0 : i32
    %c0_i32_1 = arith.constant 0 : i32
    return %c0_i32, %c0_i32_0 : i32, i32
  }
  func.func @transform_2(%arg0: i32) -> (i32, i32) {
    %c0_i32 = arith.constant 0 : i32
    %c0_i32_0 = arith.constant 0 : i32
    %c0_i32_1 = arith.constant 0 : i32
    return %c0_i32, %c0_i32_0 : i32, i32
  }
  func.func @transform_3(%arg0: i32) -> (i32, i32) {
    %c0_i32 = arith.constant 0 : i32
    %c0_i32_0 = arith.constant 0 : i32
    %c0_i32_1 = arith.constant 0 : i32
    return %c0_i32, %c0_i32_0 : i32, i32
  }
  func.func @transform_4(%arg0: i32) -> (i32, i32) {
    %c0_i32 = arith.constant 0 : i32
    %c0_i32_0 = arith.constant 0 : i32
    %c0_i32_1 = arith.constant 0 : i32
    return %c0_i32, %c0_i32_0 : i32, i32
  }
  func.func @transform_5(%arg0: i32) -> (i32, i32) {
    %c0_i32 = arith.constant 0 : i32
    %c0_i32_0 = arith.constant 0 : i32
    %c0_i32_1 = arith.constant 0 : i32
    return %c0_i32, %c0_i32_0 : i32, i32
  }
  func.func @transform_6(%arg0: i32) -> (i32, i32) {
    %c0_i32 = arith.constant 0 : i32
    %c0_i32_0 = arith.constant 0 : i32
    %c0_i32_1 = arith.constant 0 : i32
    return %c0_i32, %c0_i32_0 : i32, i32
  }
  func.func @transform_7(%arg0: i32) -> (i32, i32) {
    %c0_i32 = arith.constant 0 : i32
    %c0_i32_0 = arith.constant 0 : i32
    return %arg0, %c0_i32 : i32, i32
  }
}

module attributes {stable_mosaic.version = 11 : i64} {
  func.func @_mlp_kernel(%arg0: i32, %arg1: memref<2x16xf32, #tpu.memory_space<vmem>>, %arg2: memref<16x128xf32, #tpu.memory_space<vmem>>, %arg3: memref<1x128xf32, #tpu.memory_space<vmem>>, %arg4: memref<128x128xf32, #tpu.memory_space<vmem>>, %arg5: memref<1x128xf32, #tpu.memory_space<vmem>>, %arg6: memref<128x1xf32, #tpu.memory_space<vmem>>, %arg7: memref<1x1xf32, #tpu.memory_space<vmem>>, %arg8: memref<2x1xf32, #tpu.memory_space<vmem>>) attributes {dimension_semantics = [#tpu.dimension_semantics<parallel>], iteration_bounds = array<i64: 1>, scalar_prefetch = 0 : i64, scratch_operands = 0 : i64, tpu.core_type = #tpu.core_type<tc>, window_params = [{transform_indices = @transform_0, window_bounds = array<i64: 2, 16>}, {pipeline_mode = #tpu.pipeline_mode<synchronous>, transform_indices = @transform_1, window_bounds = array<i64: 16, 128>}, {pipeline_mode = #tpu.pipeline_mode<synchronous>, transform_indices = @transform_2, window_bounds = array<i64: 1, 128>}, {pipeline_mode = #tpu.pipeline_mode<synchronous>, transform_indices = @transform_3, window_bounds = array<i64: 128, 128>}, {pipeline_mode = #tpu.pipeline_mode<synchronous>, transform_indices = @transform_4, window_bounds = array<i64: 1, 128>}, {pipeline_mode = #tpu.pipeline_mode<synchronous>, transform_indices = @transform_5, window_bounds = array<i64: 128, 1>}, {pipeline_mode = #tpu.pipeline_mode<synchronous>, transform_indices = @transform_6, window_bounds = array<i64: 1, 1>}, {transform_indices = @transform_7, window_bounds = array<i64: 2, 1>}]} {
    %c0 = arith.constant 0 : index
    %c0_0 = arith.constant 0 : index
    %0 = vector.load %arg1[%c0, %c0_0] : memref<2x16xf32, #tpu.memory_space<vmem>>, vector<2x16xf32>
    %c0_1 = arith.constant 0 : index
    %c0_2 = arith.constant 0 : index
    %1 = vector.load %arg2[%c0_1, %c0_2] : memref<16x128xf32, #tpu.memory_space<vmem>>, vector<16x128xf32>
    %c0_3 = arith.constant 0 : index
    %c0_4 = arith.constant 0 : index
    %2 = vector.load %arg3[%c0_3, %c0_4] : memref<1x128xf32, #tpu.memory_space<vmem>>, vector<1x128xf32>
    %cst = arith.constant dense<0.000000e+00> : vector<2x128xf32>
    %3 = tpu.matmul %0, %1, %cst {dimension_numbers = #tpu.dot_dimension_numbers<[1], [0], [0], [1], [0, 0, 1, 1], [], []>} : vector<2x16xf32>, vector<16x128xf32>, vector<2x128xf32> -> vector<2x128xf32>
    %4 = vector.broadcast %2 : vector<1x128xf32> to vector<2x128xf32>
    %5 = arith.addf %3, %4 : vector<2x128xf32>
    %cst_5 = arith.constant 0.000000e+00 : f32
    %6 = vector.broadcast %cst_5 : f32 to vector<2x128xf32>
    %7 = arith.cmpf ogt, %5, %6 : vector<2x128xf32>
    %cst_6 = arith.constant 2.000000e-01 : f32
    %8 = vector.broadcast %cst_6 : f32 to vector<2x128xf32>
    %9 = arith.mulf %8, %5 : vector<2x128xf32>
    %10 = arith.select %7, %5, %9 : vector<2x128xi1>, vector<2x128xf32>
    %c0_7 = arith.constant 0 : index
    %c0_8 = arith.constant 0 : index
    %11 = vector.load %arg4[%c0_7, %c0_8] : memref<128x128xf32, #tpu.memory_space<vmem>>, vector<128x128xf32>
    %c0_9 = arith.constant 0 : index
    %c0_10 = arith.constant 0 : index
    %12 = vector.load %arg5[%c0_9, %c0_10] : memref<1x128xf32, #tpu.memory_space<vmem>>, vector<1x128xf32>
    %cst_11 = arith.constant dense<0.000000e+00> : vector<2x128xf32>
    %13 = tpu.matmul %10, %11, %cst_11 {dimension_numbers = #tpu.dot_dimension_numbers<[1], [0], [0], [1], [0, 0, 1, 1], [], []>} : vector<2x128xf32>, vector<128x128xf32>, vector<2x128xf32> -> vector<2x128xf32>
    %14 = vector.broadcast %12 : vector<1x128xf32> to vector<2x128xf32>
    %15 = arith.addf %13, %14 : vector<2x128xf32>
    %cst_12 = arith.constant 0.000000e+00 : f32
    %16 = vector.broadcast %cst_12 : f32 to vector<2x128xf32>
    %17 = arith.cmpf ogt, %15, %16 : vector<2x128xf32>
    %cst_13 = arith.constant 2.000000e-01 : f32
    %18 = vector.broadcast %cst_13 : f32 to vector<2x128xf32>
    %19 = arith.mulf %18, %15 : vector<2x128xf32>
    %20 = arith.select %17, %15, %19 : vector<2x128xi1>, vector<2x128xf32>
    %c0_14 = arith.constant 0 : index
    %c0_15 = arith.constant 0 : index
    %21 = vector.load %arg6[%c0_14, %c0_15] : memref<128x1xf32, #tpu.memory_space<vmem>>, vector<128x1xf32>
    %c0_16 = arith.constant 0 : index
    %c0_17 = arith.constant 0 : index
    %22 = vector.load %arg7[%c0_16, %c0_17] : memref<1x1xf32, #tpu.memory_space<vmem>>, vector<1x1xf32>
    %cst_18 = arith.constant dense<0.000000e+00> : vector<2x1xf32>
    %23 = tpu.matmul %20, %21, %cst_18 {dimension_numbers = #tpu.dot_dimension_numbers<[1], [0], [0], [1], [0, 0, 1, 1], [], []>} : vector<2x128xf32>, vector<128x1xf32>, vector<2x1xf32> -> vector<2x1xf32>
    %24 = vector.broadcast %22 : vector<1x1xf32> to vector<2x1xf32>
    %25 = arith.addf %23, %24 : vector<2x1xf32>
    %c0_19 = arith.constant 0 : index
    %c0_20 = arith.constant 0 : index
    %26 = vector.load %arg8[%c0_19, %c0_20] : memref<2x1xf32, #tpu.memory_space<vmem>>, vector<2x1xf32>
    tpu.vector_store %arg8[%c0_19, %c0_20], %25 {strides = array<i32>} : memref<2x1xf32, #tpu.memory_space<vmem>>, vector<2x1xf32>,
    return
  }
  func.func @transform_0(%arg0: i32) -> (i32, i32) {
    %c0_i32 = arith.constant 0 : i32
    %c0_i32_0 = arith.constant 0 : i32
    return %arg0, %c0_i32 : i32, i32
  }
  func.func @transform_1(%arg0: i32) -> (i32, i32) {
    %c0_i32 = arith.constant 0 : i32
    %c0_i32_0 = arith.constant 0 : i32
    %c0_i32_1 = arith.constant 0 : i32
    return %c0_i32, %c0_i32_0 : i32, i32
  }
  func.func @transform_2(%arg0: i32) -> (i32, i32) {
    %c0_i32 = arith.constant 0 : i32
    %c0_i32_0 = arith.constant 0 : i32
    %c0_i32_1 = arith.constant 0 : i32
    return %c0_i32, %c0_i32_0 : i32, i32
  }
  func.func @transform_3(%arg0: i32) -> (i32, i32) {
    %c0_i32 = arith.constant 0 : i32
    %c0_i32_0 = arith.constant 0 : i32
    %c0_i32_1 = arith.constant 0 : i32
    return %c0_i32, %c0_i32_0 : i32, i32
  }
  func.func @transform_4(%arg0: i32) -> (i32, i32) {
    %c0_i32 = arith.constant 0 : i32
    %c0_i32_0 = arith.constant 0 : i32
    %c0_i32_1 = arith.constant 0 : i32
    return %c0_i32, %c0_i32_0 : i32, i32
  }
  func.func @transform_5(%arg0: i32) -> (i32, i32) {
    %c0_i32 = arith.constant 0 : i32
    %c0_i32_0 = arith.constant 0 : i32
    %c0_i32_1 = arith.constant 0 : i32
    return %c0_i32, %c0_i32_0 : i32, i32
  }
  func.func @transform_6(%arg0: i32) -> (i32, i32) {
    %c0_i32 = arith.constant 0 : i32
    %c0_i32_0 = arith.constant 0 : i32
    %c0_i32_1 = arith.constant 0 : i32
    return %c0_i32, %c0_i32_0 : i32, i32
  }
  func.func @transform_7(%arg0: i32) -> (i32, i32) {
    %c0_i32 = arith.constant 0 : i32
    %c0_i32_0 = arith.constant 0 : i32
    return %arg0, %c0_i32 : i32, i32
  }
}

</mosaic_0001>

<llo_original>
// kernel: tpu_custom_call.1
$region0: #{tpu_custom_call.1}
  #allocation0 [shape = 'u32[]', space=smem, size = 0x4, offset = 0x4, fixed_abs, tag = 'smem constant byte address 0x4 - core index']
  #allocation1 [shape = 'u32[144,128]{1,0:T(1,128)}', space=vmem, size = 0x12000, scoped, tag = 'internal scratch']
  #allocation2 [shape = 'f32[1,1]{1,0:T(1,128)S(1)}', space=vmem, size = 0x200, scoped, tag = 'scoped memory for tpu_custom_call.1']
  %s0 = inlined_call_operand.hbm [shape: f32[2,16], index: 0, kind: input, shape index: {}]
  %s1 = inlined_call_operand.vmem [shape: f32[16,128], index: 1, kind: input, shape index: {}]
  %s2 = inlined_call_operand.hbm [shape: f32[1,128], index: 2, kind: input, shape index: {}]
  %s3 = inlined_call_operand.vmem [shape: f32[128,128], index: 3, kind: input, shape index: {}]
  %s4 = inlined_call_operand.vmem [shape: f32[1,128], index: 4, kind: input, shape index: {}]
  %s5 = inlined_call_operand.vmem [shape: f32[128,1], index: 5, kind: input, shape index: {}]
  %s6 = inlined_call_operand.<no memory space> [shape: f32[1,1], index: 6, kind: input, shape index: {}]
  %s7 = inlined_call_operand.vmem [shape: f32[2,1], index: 7, kind: output, shape index: {}]
  %s8 = sld [smem:[#allocation0]]
  $region46: #{tpu_custom_call.1} parent=0
    _
  %s10 = ssub.s32 1, %s8
  %s11 = scalar_select 0, %s10, %s8
  %v12 = vstv %s6
  %13 = vst [vmem:[#allocation2] sm:$0x1] %v12
  $region1: #{tpu_custom_call.1} parent=0
    #allocation3 [shape = 'u8[1024]{0}', space=vmem, size = 0x400, scoped, tag = 'input window, operand 0, single buffered']
    #allocation4 [shape = 's32[1]{0}', space=sflag, size = 0x4, scoped, tag = 'scoped memory for tpu_custom_call.1']
    #allocation5 [shape = 'u8[512]{0}', space=vmem, size = 0x400, scoped, tag = 'input window, operand 2, single buffered']
    #allocation6 [shape = 's32[1]{0}', space=sflag, size = 0x4, scoped, tag = 'scoped memory for tpu_custom_call.1']
    %14 = vsyncpa [#allocation4], 0
    %15 = vsyncpa [#allocation6], 0
    // Predicated region
    $region2: #{tpu_custom_call.1} parent=1 // pred_check
      _
    $region3: #{tpu_custom_call.1} parent=1 // pred_check_branch
      %17 = sbr.rel (0) target = $region5
    $region4: #{tpu_custom_call.1} parent=1 // pred_region
      %s19 = ssub.s32 32, 32
      %20 = vsyncadd [#allocation4], %s19
      %s22 = sshll.u32 [#allocation3], 4
      %s23 = int_to_ptr.vmem [resolvable:$true] %s22
      %25 = dma.hbm_to_vmem [thread:$0]  %s0, 32, %s23, [#allocation4]
    $region5: #{tpu_custom_call.1} parent=1 // pred_fallthru
      _
    // Predicated region
    $region6: #{tpu_custom_call.1} parent=1 // pred_check
      _
    $region7: #{tpu_custom_call.1} parent=1 // pred_check_branch
      %27 = sbr.rel (0) target = $region9
    $region8: #{tpu_custom_call.1} parent=1 // pred_region
      _
    $region9: #{tpu_custom_call.1} parent=1 // pred_fallthru
      _
    // Predicated region
    $region10: #{tpu_custom_call.1} parent=1 // pred_check
      _
    $region11: #{tpu_custom_call.1} parent=1 // pred_check_branch
      %29 = sbr.rel (0) target = $region13
    $region12: #{tpu_custom_call.1} parent=1 // pred_region
      %s31 = ssub.s32 16, 16
      %32 = vsyncadd [#allocation6], %s31
      %s34 = sshll.u32 [#allocation5], 4
      %s35 = int_to_ptr.vmem [resolvable:$true] %s34
      %37 = dma.hbm_to_vmem [thread:$0]  %s2, 16, %s35, [#allocation6]
    $region13: #{tpu_custom_call.1} parent=1 // pred_fallthru
      _
    // Predicated region
    $region14: #{tpu_custom_call.1} parent=1 // pred_check
      _
    $region15: #{tpu_custom_call.1} parent=1 // pred_check_branch
      %39 = sbr.rel (0) target = $region17
    $region16: #{tpu_custom_call.1} parent=1 // pred_region
      _
    $region17: #{tpu_custom_call.1} parent=1 // pred_fallthru
      _
    // Predicated region
    $region18: #{tpu_custom_call.1} parent=1 // pred_check
      _
    $region19: #{tpu_custom_call.1} parent=1 // pred_check_branch
      %41 = sbr.rel (0) target = $region21
    $region20: #{tpu_custom_call.1} parent=1 // pred_region
      _
    $region21: #{tpu_custom_call.1} parent=1 // pred_fallthru
      _
    // Predicated region
    $region22: #{tpu_custom_call.1} parent=1 // pred_check
      _
    $region23: #{tpu_custom_call.1} parent=1 // pred_check_branch
      %43 = sbr.rel (0) target = $region25
    $region24: #{tpu_custom_call.1} parent=1 // pred_region
      _
    $region25: #{tpu_custom_call.1} parent=1 // pred_fallthru
      _
    // Predicated region
    $region26: #{tpu_custom_call.1} parent=1 // pred_check
      _
    $region27: #{tpu_custom_call.1} parent=1 // pred_check_branch
      %45 = sbr.rel (0) target = $region29
    $region28: #{tpu_custom_call.1} parent=1 // pred_region
      _
    $region29: #{tpu_custom_call.1} parent=1 // pred_fallthru
      _
    // Predicated region
    $region30: #{tpu_custom_call.1} parent=1 // pred_check
      _
    $region31: #{tpu_custom_call.1} parent=1 // pred_check_branch
      %47 = sbr.rel (0) target = $region33
    $region32: #{tpu_custom_call.1} parent=1 // pred_region
      %48 = dma.done [#allocation4], 32
    $region33: #{tpu_custom_call.1} parent=1 // pred_fallthru
      _
    // Predicated region
    $region34: #{tpu_custom_call.1} parent=1 // pred_check
      _
    $region35: #{tpu_custom_call.1} parent=1 // pred_check_branch
      %50 = sbr.rel (0) target = $region37
    $region36: #{tpu_custom_call.1} parent=1 // pred_region
      %51 = dma.done [#allocation6], 16
    $region37: #{tpu_custom_call.1} parent=1 // pred_fallthru
      _
    %v52 = vld [vmem:[#allocation3] sm:$0x3]
    %v53 = vld [vmem:[%s1] sm:$0xff]
    %v54 = vld [vmem:[%s1 + $0x8] sm:$0xff]
    %v55 = vld [vmem:[#allocation5] sm:$0x1]
    %v57 = vlaneseq
    %v58 = vshrl.u32 %v57, 7
    %v59 = vsub.s32 0, %v58
    %v60 = vrot.slane %v55, %v59
    %vm62 = vcmask 130048
    %v64 = vsel %vm62, %v52, 0
    %66 = vmatprep.subr.mxu0 0.0
    %67 = vmatpush1.msra.mxu0 %v53
    %68 = vmatprep.subr.mxu0 0.0
    %69 = vmatpush1.msra.mxu0 %v54
    %70 = vmatprep.subr.mxu0 0.0
    %71 = vmatpush1.msra.mxu0 0.0
    %72 = vmatprep.subr.mxu0 0.0
    %73 = vmatpush1.msra.mxu0 0.0
    %74 = vmatprep.subr.mxu0 0.0
    %75 = vmatpush1.msra.mxu0 0.0
    %76 = vmatprep.subr.mxu0 0.0
    %77 = vmatpush1.msra.mxu0 0.0
    %78 = vmatprep.subr.mxu0 0.0
    %79 = vmatpush1.msra.mxu0 0.0
    %80 = vmatprep.subr.mxu0 0.0
    %81 = vmatpush1.msra.mxu0 0.0
    %82 = vmatprep.subr.mxu0 0.0
    %83 = vmatpush1.msra.mxu0 0.0
    %84 = vmatprep.subr.mxu0 0.0
    %85 = vmatpush1.msra.mxu0 0.0
    %86 = vmatprep.subr.mxu0 0.0
    %87 = vmatpush1.msra.mxu0 0.0
    %88 = vmatprep.subr.mxu0 0.0
    %89 = vmatpush1.msra.mxu0 0.0
    %90 = vmatprep.subr.mxu0 0.0
    %91 = vmatpush1.msra.mxu0 0.0
    %92 = vmatprep.subr.mxu0 0.0
    %93 = vmatpush1.msra.mxu0 0.0
    %94 = vmatprep.subr.mxu0 0.0
    %95 = vmatpush1.msra.mxu0 0.0
    %96 = vmatprep.subr.mxu0 0.0
    %97 = vmatpush1.msra.mxu0 0.0
    %98 = vmatprep.subr.mxu0 0.0
    %99 = vmatpush1.msra.mxu0 0.0
    %100 = vmatprep.subr.mxu0 0.0
    %101 = vmatpush1.msra.mxu0 0.0
    %102 = vmatprep.subr.mxu0 0.0
    %103 = vmatpush1.msra.mxu0 0.0
    %104 = vmatprep.subr.mxu0 0.0
    %105 = vmatpush1.msra.mxu0 0.0
    %106 = vmatprep.subr.mxu0 0.0
    %107 = vmatpush1.msra.mxu0 0.0
    %108 = vmatprep.subr.mxu0 0.0
    %109 = vmatpush1.msra.mxu0 0.0
    %110 = vmatprep.subr.mxu0 0.0
    %111 = vmatpush1.msra.mxu0 0.0
    %112 = vmatprep.subr.mxu0 0.0
    %113 = vmatpush1.msra.mxu0 0.0
    %114 = vmatprep.subr.mxu0 0.0
    %115 = vmatpush1.msra.mxu0 0.0
    %116 = vmatprep.subr.mxu0 0.0
    %117 = vmatpush1.msra.mxu0 0.0
    %118 = vmatprep.subr.mxu0 0.0
    %119 = vmatpush1.msra.mxu0 0.0
    %120 = vmatprep.subr.mxu0 0.0
    %121 = vmatpush1.msra.mxu0 0.0
    %122 = vmatprep.subr.mxu0 0.0
    %123 = vmatpush1.msra.mxu0 0.0
    %124 = vmatprep.subr.mxu0 0.0
    %125 = vmatpush1.msra.mxu0 0.0
    %126 = vmatprep.subr.mxu0 0.0
    %127 = vmatpush1.msra.mxu0 0.0
    %128 = vmatprep.subr.mxu0 0.0
    %129 = vmatpush1.msra.mxu0 0.0
    %130 = vmatprep.mubr.f32.mxu0 0.0
    %131 = vmatmul.mubr.f32.gmra.mrb[0].mxu0 %v64
    %v132 = vpop.f32.mrb[0].mxu0
    %v133 = vadd.f32 %v60, %v132
    %v134 = vpop.f32.mrb[0].mxu0
    %135 = vdwg.mxu0
    %vm136 = vcmp.gt.f32.partialorder %v133, 0.0
    %v137 = vmul.f32 %v133, 0.2
    %v138 = vsel %vm136, %v133, %v137
    %v139 = vld [vmem:[%s3] sm:$0xff]
    %v140 = vld [vmem:[%s3 + $0x8] sm:$0xff]
    %v141 = vld [vmem:[%s3 + $0x10] sm:$0xff]
    %v142 = vld [vmem:[%s3 + $0x18] sm:$0xff]
    %v143 = vld [vmem:[%s3 + $0x20] sm:$0xff]
    %v144 = vld [vmem:[%s3 + $0x28] sm:$0xff]
    %v145 = vld [vmem:[%s3 + $0x30] sm:$0xff]
    %v146 = vld [vmem:[%s3 + $0x38] sm:$0xff]
    %v147 = vld [vmem:[%s3 + $0x40] sm:$0xff]
    %v148 = vld [vmem:[%s3 + $0x48] sm:$0xff]
    %v149 = vld [vmem:[%s3 + $0x50] sm:$0xff]
    %v150 = vld [vmem:[%s3 + $0x58] sm:$0xff]
    %v151 = vld [vmem:[%s3 + $0x60] sm:$0xff]
    %v152 = vld [vmem:[%s3 + $0x68] sm:$0xff]
    %v153 = vld [vmem:[%s3 + $0x70] sm:$0xff]
    %v154 = vld [vmem:[%s3 + $0x78] sm:$0xff]
    %v155 = vld [vmem:[%s4] sm:$0x1]
    %v157 = vlaneseq
    %v158 = vshrl.u32 %v157, 7
    %v159 = vsub.s32 0, %v158
    %v160 = vrot.slane %v155, %v159
    %162 = vmatprep.subr.mxu0 0.0
    %163 = vmatpush1.msra.mxu0 %v139
    %164 = vmatprep.subr.mxu0 0.0
    %165 = vmatpush1.msra.mxu0 %v140
    %166 = vmatprep.subr.mxu0 0.0
    %167 = vmatpush1.msra.mxu0 %v141
    %168 = vmatprep.subr.mxu0 0.0
    %169 = vmatpush1.msra.mxu0 %v142
    %170 = vmatprep.subr.mxu0 0.0
    %171 = vmatpush1.msra.mxu0 %v143
    %172 = vmatprep.subr.mxu0 0.0
    %173 = vmatpush1.msra.mxu0 %v144
    %174 = vmatprep.subr.mxu0 0.0
    %175 = vmatpush1.msra.mxu0 %v145
    %176 = vmatprep.subr.mxu0 0.0
    %177 = vmatpush1.msra.mxu0 %v146
    %178 = vmatprep.subr.mxu0 0.0
    %179 = vmatpush1.msra.mxu0 %v147
    %180 = vmatprep.subr.mxu0 0.0
    %181 = vmatpush1.msra.mxu0 %v148
    %182 = vmatprep.subr.mxu0 0.0
    %183 = vmatpush1.msra.mxu0 %v149
    %184 = vmatprep.subr.mxu0 0.0
    %185 = vmatpush1.msra.mxu0 %v150
    %186 = vmatprep.subr.mxu0 0.0
    %187 = vmatpush1.msra.mxu0 %v151
    %188 = vmatprep.subr.mxu0 0.0
    %189 = vmatpush1.msra.mxu0 %v152
    %190 = vmatprep.subr.mxu0 0.0
    %191 = vmatpush1.msra.mxu0 %v153
    %192 = vmatprep.subr.mxu0 0.0
    %193 = vmatpush1.msra.mxu0 %v154
    %194 = vmatprep.subr.mxu0 0.0
    %195 = vmatpush1.msra.mxu0 0.0
    %196 = vmatprep.subr.mxu0 0.0
    %197 = vmatpush1.msra.mxu0 0.0
    %198 = vmatprep.subr.mxu0 0.0
    %199 = vmatpush1.msra.mxu0 0.0
    %200 = vmatprep.subr.mxu0 0.0
    %201 = vmatpush1.msra.mxu0 0.0
    %202 = vmatprep.subr.mxu0 0.0
    %203 = vmatpush1.msra.mxu0 0.0
    %204 = vmatprep.subr.mxu0 0.0
    %205 = vmatpush1.msra.mxu0 0.0
    %206 = vmatprep.subr.mxu0 0.0
    %207 = vmatpush1.msra.mxu0 0.0
    %208 = vmatprep.subr.mxu0 0.0
    %209 = vmatpush1.msra.mxu0 0.0
    %210 = vmatprep.subr.mxu0 0.0
    %211 = vmatpush1.msra.mxu0 0.0
    %212 = vmatprep.subr.mxu0 0.0
    %213 = vmatpush1.msra.mxu0 0.0
    %214 = vmatprep.subr.mxu0 0.0
    %215 = vmatpush1.msra.mxu0 0.0
    %216 = vmatprep.subr.mxu0 0.0
    %217 = vmatpush1.msra.mxu0 0.0
    %218 = vmatprep.subr.mxu0 0.0
    %219 = vmatpush1.msra.mxu0 0.0
    %220 = vmatprep.subr.mxu0 0.0
    %221 = vmatpush1.msra.mxu0 0.0
    %222 = vmatprep.subr.mxu0 0.0
    %223 = vmatpush1.msra.mxu0 0.0
    %224 = vmatprep.subr.mxu0 0.0
    %225 = vmatpush1.msra.mxu0 0.0
    %226 = vmatprep.mubr.f32.mxu0 0.0
    %227 = vmatmul.mubr.f32.gmra.mrb[0].mxu0 %v138
    %v228 = vpop.f32.mrb[0].mxu0
    %v229 = vadd.f32 %v160, %v228
    %v230 = vpop.f32.mrb[0].mxu0
    %231 = vdwg.mxu0
    %vm232 = vcmp.gt.f32.partialorder %v229, 0.0
    %v233 = vmul.f32 %v229, 0.2
    %v234 = vsel %vm232, %v229, %v233
    %v235 = vld [vmem:[%s5] sm:$0xff]
    %v236 = vld [vmem:[%s5 + $0x8] sm:$0xff]
    %v237 = vld [vmem:[%s5 + $0x10] sm:$0xff]
    %v238 = vld [vmem:[%s5 + $0x18] sm:$0xff]
    %v239 = vld [vmem:[%s5 + $0x20] sm:$0xff]
    %v240 = vld [vmem:[%s5 + $0x28] sm:$0xff]
    %v241 = vld [vmem:[%s5 + $0x30] sm:$0xff]
    %v242 = vld [vmem:[%s5 + $0x38] sm:$0xff]
    %v243 = vld [vmem:[%s5 + $0x40] sm:$0xff]
    %v244 = vld [vmem:[%s5 + $0x48] sm:$0xff]
    %v245 = vld [vmem:[%s5 + $0x50] sm:$0xff]
    %v246 = vld [vmem:[%s5 + $0x58] sm:$0xff]
    %v247 = vld [vmem:[%s5 + $0x60] sm:$0xff]
    %v248 = vld [vmem:[%s5 + $0x68] sm:$0xff]
    %v249 = vld [vmem:[%s5 + $0x70] sm:$0xff]
    %v250 = vld [vmem:[%s5 + $0x78] sm:$0xff]
    %v251 = vld [vmem:[#allocation2] sm:$0x1]
    %v253 = vlaneseq
    %v254 = vshrl.u32 %v253, 7
    %v255 = vsub.s32 0, %v254
    %v256 = vrot.slane %v251, %v255
    %258 = vmatprep.subr.mxu0 0.0
    %259 = vmatpush1.msra.mxu0 %v235
    %260 = vmatprep.subr.mxu0 0.0
    %261 = vmatpush1.msra.mxu0 %v236
    %262 = vmatprep.subr.mxu0 0.0
    %263 = vmatpush1.msra.mxu0 %v237
    %264 = vmatprep.subr.mxu0 0.0
    %265 = vmatpush1.msra.mxu0 %v238
    %266 = vmatprep.subr.mxu0 0.0
    %267 = vmatpush1.msra.mxu0 %v239
    %268 = vmatprep.subr.mxu0 0.0
    %269 = vmatpush1.msra.mxu0 %v240
    %270 = vmatprep.subr.mxu0 0.0
    %271 = vmatpush1.msra.mxu0 %v241
    %272 = vmatprep.subr.mxu0 0.0
    %273 = vmatpush1.msra.mxu0 %v242
    %274 = vmatprep.subr.mxu0 0.0
    %275 = vmatpush1.msra.mxu0 %v243
    %276 = vmatprep.subr.mxu0 0.0
    %277 = vmatpush1.msra.mxu0 %v244
    %278 = vmatprep.subr.mxu0 0.0
    %279 = vmatpush1.msra.mxu0 %v245
    %280 = vmatprep.subr.mxu0 0.0
    %281 = vmatpush1.msra.mxu0 %v246
    %282 = vmatprep.subr.mxu0 0.0
    %283 = vmatpush1.msra.mxu0 %v247
    %284 = vmatprep.subr.mxu0 0.0
    %285 = vmatpush1.msra.mxu0 %v248
    %286 = vmatprep.subr.mxu0 0.0
    %287 = vmatpush1.msra.mxu0 %v249
    %288 = vmatprep.subr.mxu0 0.0
    %289 = vmatpush1.msra.mxu0 %v250
    %290 = vmatprep.subr.mxu0 0.0
    %291 = vmatpush1.msra.mxu0 0.0
    %292 = vmatprep.subr.mxu0 0.0
    %293 = vmatpush1.msra.mxu0 0.0
    %294 = vmatprep.subr.mxu0 0.0
    %295 = vmatpush1.msra.mxu0 0.0
    %296 = vmatprep.subr.mxu0 0.0
    %297 = vmatpush1.msra.mxu0 0.0
    %298 = vmatprep.subr.mxu0 0.0
    %299 = vmatpush1.msra.mxu0 0.0
    %300 = vmatprep.subr.mxu0 0.0
    %301 = vmatpush1.msra.mxu0 0.0
    %302 = vmatprep.subr.mxu0 0.0
    %303 = vmatpush1.msra.mxu0 0.0
    %304 = vmatprep.subr.mxu0 0.0
    %305 = vmatpush1.msra.mxu0 0.0
    %306 = vmatprep.subr.mxu0 0.0
    %307 = vmatpush1.msra.mxu0 0.0
    %308 = vmatprep.subr.mxu0 0.0
    %309 = vmatpush1.msra.mxu0 0.0
    %310 = vmatprep.subr.mxu0 0.0
    %311 = vmatpush1.msra.mxu0 0.0
    %312 = vmatprep.subr.mxu0 0.0
    %313 = vmatpush1.msra.mxu0 0.0
    %314 = vmatprep.subr.mxu0 0.0
    %315 = vmatpush1.msra.mxu0 0.0
    %316 = vmatprep.subr.mxu0 0.0
    %317 = vmatpush1.msra.mxu0 0.0
    %318 = vmatprep.subr.mxu0 0.0
    %319 = vmatpush1.msra.mxu0 0.0
    %320 = vmatprep.subr.mxu0 0.0
    %321 = vmatpush1.msra.mxu0 0.0
    %322 = vmatprep.mubr.f32.mxu0 0.0
    %323 = vmatmul.mubr.f32.gmra.mrb[0].mxu0 %v234
    %v324 = vpop.f32.mrb[0].mxu0
    %v325 = vadd.f32 %v256, %v324
    %v326 = vpop.f32.mrb[0].mxu0
    %327 = vdwg.mxu0
    %vm328 = vcmask 1024
    %329 = vst.msk [vmem:[%s7] sm:$0x3] %vm328, %v325
    // Predicated region
    $region38: #{tpu_custom_call.1} parent=1 // pred_check
      _
    $region39: #{tpu_custom_call.1} parent=1 // pred_check_branch
      %331 = sbr.rel (0) target = $region41
    $region40: #{tpu_custom_call.1} parent=1 // pred_region
      _
    $region41: #{tpu_custom_call.1} parent=1 // pred_fallthru
      _
    // Predicated region
    $region42: #{tpu_custom_call.1} parent=1 // pred_check
      _
    $region43: #{tpu_custom_call.1} parent=1 // pred_check_branch
      %333 = sbr.rel (0) target = $region45
    $region44: #{tpu_custom_call.1} parent=1 // pred_region
      _
    $region45: #{tpu_custom_call.1} parent=1 // pred_fallthru
      _
    %334 = vsyncpa [#allocation4], 1
    %335 = vsyncpa [#allocation6], 1

// kernel: tpu_custom_call.1
$region0: #{tpu_custom_call.1}
  #allocation0 [shape = 'u32[]', space=smem, size = 0x4, offset = 0x4, fixed_abs, tag = 'smem constant byte address 0x4 - core index']
  #allocation1 [shape = 'u32[144,128]{1,0:T(1,128)}', space=vmem, size = 0x12000, scoped, tag = 'internal scratch']
  #allocation2 [shape = 'f32[1,1]{1,0:T(1,128)S(1)}', space=vmem, size = 0x200, scoped, tag = 'scoped memory for tpu_custom_call.1']
  %s0 = inlined_call_operand.hbm [shape: f32[2,16], index: 0, kind: input, shape index: {}]
  %s1 = inlined_call_operand.vmem [shape: f32[16,128], index: 1, kind: input, shape index: {}]
  %s2 = inlined_call_operand.hbm [shape: f32[1,128], index: 2, kind: input, shape index: {}]
  %s3 = inlined_call_operand.vmem [shape: f32[128,128], index: 3, kind: input, shape index: {}]
  %s4 = inlined_call_operand.vmem [shape: f32[1,128], index: 4, kind: input, shape index: {}]
  %s5 = inlined_call_operand.vmem [shape: f32[128,1], index: 5, kind: input, shape index: {}]
  %s6 = inlined_call_operand.<no memory space> [shape: f32[1,1], index: 6, kind: input, shape index: {}]
  %s7 = inlined_call_operand.vmem [shape: f32[2,1], index: 7, kind: output, shape index: {}]
  %s8 = sld [smem:[#allocation0]]
  $region46: #{tpu_custom_call.1} parent=0
    _
  %s10 = ssub.s32 1, %s8
  %s11 = scalar_select 0, %s10, %s8
  %v12 = vstv %s6
  %13 = vst [vmem:[#allocation2] sm:$0x1] %v12
  $region1: #{tpu_custom_call.1} parent=0
    #allocation3 [shape = 'u8[1024]{0}', space=vmem, size = 0x400, scoped, tag = 'input window, operand 0, single buffered']
    #allocation4 [shape = 's32[1]{0}', space=sflag, size = 0x4, scoped, tag = 'scoped memory for tpu_custom_call.1']
    #allocation5 [shape = 'u8[512]{0}', space=vmem, size = 0x400, scoped, tag = 'input window, operand 2, single buffered']
    #allocation6 [shape = 's32[1]{0}', space=sflag, size = 0x4, scoped, tag = 'scoped memory for tpu_custom_call.1']
    %14 = vsyncpa [#allocation4], 0
    %15 = vsyncpa [#allocation6], 0
    // Predicated region
    $region2: #{tpu_custom_call.1} parent=1 // pred_check
      _
    $region3: #{tpu_custom_call.1} parent=1 // pred_check_branch
      %17 = sbr.rel (0) target = $region5
    $region4: #{tpu_custom_call.1} parent=1 // pred_region
      %s19 = ssub.s32 32, 32
      %20 = vsyncadd [#allocation4], %s19
      %s22 = sshll.u32 [#allocation3], 4
      %s23 = int_to_ptr.vmem [resolvable:$true] %s22
      %25 = dma.hbm_to_vmem [thread:$0]  %s0, 32, %s23, [#allocation4]
    $region5: #{tpu_custom_call.1} parent=1 // pred_fallthru
      _
    // Predicated region
    $region6: #{tpu_custom_call.1} parent=1 // pred_check
      _
    $region7: #{tpu_custom_call.1} parent=1 // pred_check_branch
      %27 = sbr.rel (0) target = $region9
    $region8: #{tpu_custom_call.1} parent=1 // pred_region
      _
    $region9: #{tpu_custom_call.1} parent=1 // pred_fallthru
      _
    // Predicated region
    $region10: #{tpu_custom_call.1} parent=1 // pred_check
      _
    $region11: #{tpu_custom_call.1} parent=1 // pred_check_branch
      %29 = sbr.rel (0) target = $region13
    $region12: #{tpu_custom_call.1} parent=1 // pred_region
      %s31 = ssub.s32 16, 16
      %32 = vsyncadd [#allocation6], %s31
      %s34 = sshll.u32 [#allocation5], 4
      %s35 = int_to_ptr.vmem [resolvable:$true] %s34
      %37 = dma.hbm_to_vmem [thread:$0]  %s2, 16, %s35, [#allocation6]
    $region13: #{tpu_custom_call.1} parent=1 // pred_fallthru
      _
    // Predicated region
    $region14: #{tpu_custom_call.1} parent=1 // pred_check
      _
    $region15: #{tpu_custom_call.1} parent=1 // pred_check_branch
      %39 = sbr.rel (0) target = $region17
    $region16: #{tpu_custom_call.1} parent=1 // pred_region
      _
    $region17: #{tpu_custom_call.1} parent=1 // pred_fallthru
      _
    // Predicated region
    $region18: #{tpu_custom_call.1} parent=1 // pred_check
      _
    $region19: #{tpu_custom_call.1} parent=1 // pred_check_branch
      %41 = sbr.rel (0) target = $region21
    $region20: #{tpu_custom_call.1} parent=1 // pred_region
      _
    $region21: #{tpu_custom_call.1} parent=1 // pred_fallthru
      _
    // Predicated region
    $region22: #{tpu_custom_call.1} parent=1 // pred_check
      _
    $region23: #{tpu_custom_call.1} parent=1 // pred_check_branch
      %43 = sbr.rel (0) target = $region25
    $region24: #{tpu_custom_call.1} parent=1 // pred_region
      _
    $region25: #{tpu_custom_call.1} parent=1 // pred_fallthru
      _
    // Predicated region
    $region26: #{tpu_custom_call.1} parent=1 // pred_check
      _
    $region27: #{tpu_custom_call.1} parent=1 // pred_check_branch
      %45 = sbr.rel (0) target = $region29
    $region28: #{tpu_custom_call.1} parent=1 // pred_region
      _
    $region29: #{tpu_custom_call.1} parent=1 // pred_fallthru
      _
    // Predicated region
    $region30: #{tpu_custom_call.1} parent=1 // pred_check
      _
    $region31: #{tpu_custom_call.1} parent=1 // pred_check_branch
      %47 = sbr.rel (0) target = $region33
    $region32: #{tpu_custom_call.1} parent=1 // pred_region
      %48 = dma.done [#allocation4], 32
    $region33: #{tpu_custom_call.1} parent=1 // pred_fallthru
      _
    // Predicated region
    $region34: #{tpu_custom_call.1} parent=1 // pred_check
      _
    $region35: #{tpu_custom_call.1} parent=1 // pred_check_branch
      %50 = sbr.rel (0) target = $region37
    $region36: #{tpu_custom_call.1} parent=1 // pred_region
      %51 = dma.done [#allocation6], 16
    $region37: #{tpu_custom_call.1} parent=1 // pred_fallthru
      _
    %v52 = vld [vmem:[#allocation3] sm:$0x3]
    %v53 = vld [vmem:[%s1] sm:$0xff]
    %v54 = vld [vmem:[%s1 + $0x8] sm:$0xff]
    %v55 = vld [vmem:[#allocation5] sm:$0x1]
    %v57 = vlaneseq
    %v58 = vshrl.u32 %v57, 7
    %v59 = vsub.s32 0, %v58
    %v60 = vrot.slane %v55, %v59
    %vm62 = vcmask 130048
    %v64 = vsel %vm62, %v52, 0
    %66 = vmatprep.subr.mxu0 0.0
    %67 = vmatpush1.msra.mxu0 %v53
    %68 = vmatprep.subr.mxu0 0.0
    %69 = vmatpush1.msra.mxu0 %v54
    %70 = vmatprep.subr.mxu0 0.0
    %71 = vmatpush1.msra.mxu0 0.0
    %72 = vmatprep.subr.mxu0 0.0
    %73 = vmatpush1.msra.mxu0 0.0
    %74 = vmatprep.subr.mxu0 0.0
    %75 = vmatpush1.msra.mxu0 0.0
    %76 = vmatprep.subr.mxu0 0.0
    %77 = vmatpush1.msra.mxu0 0.0
    %78 = vmatprep.subr.mxu0 0.0
    %79 = vmatpush1.msra.mxu0 0.0
    %80 = vmatprep.subr.mxu0 0.0
    %81 = vmatpush1.msra.mxu0 0.0
    %82 = vmatprep.subr.mxu0 0.0
    %83 = vmatpush1.msra.mxu0 0.0
    %84 = vmatprep.subr.mxu0 0.0
    %85 = vmatpush1.msra.mxu0 0.0
    %86 = vmatprep.subr.mxu0 0.0
    %87 = vmatpush1.msra.mxu0 0.0
    %88 = vmatprep.subr.mxu0 0.0
    %89 = vmatpush1.msra.mxu0 0.0
    %90 = vmatprep.subr.mxu0 0.0
    %91 = vmatpush1.msra.mxu0 0.0
    %92 = vmatprep.subr.mxu0 0.0
    %93 = vmatpush1.msra.mxu0 0.0
    %94 = vmatprep.subr.mxu0 0.0
    %95 = vmatpush1.msra.mxu0 0.0
    %96 = vmatprep.subr.mxu0 0.0
    %97 = vmatpush1.msra.mxu0 0.0
    %98 = vmatprep.subr.mxu0 0.0
    %99 = vmatpush1.msra.mxu0 0.0
    %100 = vmatprep.subr.mxu0 0.0
    %101 = vmatpush1.msra.mxu0 0.0
    %102 = vmatprep.subr.mxu0 0.0
    %103 = vmatpush1.msra.mxu0 0.0
    %104 = vmatprep.subr.mxu0 0.0
    %105 = vmatpush1.msra.mxu0 0.0
    %106 = vmatprep.subr.mxu0 0.0
    %107 = vmatpush1.msra.mxu0 0.0
    %108 = vmatprep.subr.mxu0 0.0
    %109 = vmatpush1.msra.mxu0 0.0
    %110 = vmatprep.subr.mxu0 0.0
    %111 = vmatpush1.msra.mxu0 0.0
    %112 = vmatprep.subr.mxu0 0.0
    %113 = vmatpush1.msra.mxu0 0.0
    %114 = vmatprep.subr.mxu0 0.0
    %115 = vmatpush1.msra.mxu0 0.0
    %116 = vmatprep.subr.mxu0 0.0
    %117 = vmatpush1.msra.mxu0 0.0
    %118 = vmatprep.subr.mxu0 0.0
    %119 = vmatpush1.msra.mxu0 0.0
    %120 = vmatprep.subr.mxu0 0.0
    %121 = vmatpush1.msra.mxu0 0.0
    %122 = vmatprep.subr.mxu0 0.0
    %123 = vmatpush1.msra.mxu0 0.0
    %124 = vmatprep.subr.mxu0 0.0
    %125 = vmatpush1.msra.mxu0 0.0
    %126 = vmatprep.subr.mxu0 0.0
    %127 = vmatpush1.msra.mxu0 0.0
    %128 = vmatprep.subr.mxu0 0.0
    %129 = vmatpush1.msra.mxu0 0.0
    %130 = vmatprep.mubr.f32.mxu0 0.0
    %131 = vmatmul.mubr.f32.gmra.mrb[0].mxu0 %v64
    %v132 = vpop.f32.mrb[0].mxu0
    %v133 = vadd.f32 %v60, %v132
    %v134 = vpop.f32.mrb[0].mxu0
    %135 = vdwg.mxu0
    %vm136 = vcmp.gt.f32.partialorder %v133, 0.0
    %v137 = vmul.f32 %v133, 0.2
    %v138 = vsel %vm136, %v133, %v137
    %v139 = vld [vmem:[%s3] sm:$0xff]
    %v140 = vld [vmem:[%s3 + $0x8] sm:$0xff]
    %v141 = vld [vmem:[%s3 + $0x10] sm:$0xff]
    %v142 = vld [vmem:[%s3 + $0x18] sm:$0xff]
    %v143 = vld [vmem:[%s3 + $0x20] sm:$0xff]
    %v144 = vld [vmem:[%s3 + $0x28] sm:$0xff]
    %v145 = vld [vmem:[%s3 + $0x30] sm:$0xff]
    %v146 = vld [vmem:[%s3 + $0x38] sm:$0xff]
    %v147 = vld [vmem:[%s3 + $0x40] sm:$0xff]
    %v148 = vld [vmem:[%s3 + $0x48] sm:$0xff]
    %v149 = vld [vmem:[%s3 + $0x50] sm:$0xff]
    %v150 = vld [vmem:[%s3 + $0x58] sm:$0xff]
    %v151 = vld [vmem:[%s3 + $0x60] sm:$0xff]
    %v152 = vld [vmem:[%s3 + $0x68] sm:$0xff]
    %v153 = vld [vmem:[%s3 + $0x70] sm:$0xff]
    %v154 = vld [vmem:[%s3 + $0x78] sm:$0xff]
    %v155 = vld [vmem:[%s4] sm:$0x1]
    %v157 = vlaneseq
    %v158 = vshrl.u32 %v157, 7
    %v159 = vsub.s32 0, %v158
    %v160 = vrot.slane %v155, %v159
    %162 = vmatprep.subr.mxu0 0.0
    %163 = vmatpush1.msra.mxu0 %v139
    %164 = vmatprep.subr.mxu0 0.0
    %165 = vmatpush1.msra.mxu0 %v140
    %166 = vmatprep.subr.mxu0 0.0
    %167 = vmatpush1.msra.mxu0 %v141
    %168 = vmatprep.subr.mxu0 0.0
    %169 = vmatpush1.msra.mxu0 %v142
    %170 = vmatprep.subr.mxu0 0.0
    %171 = vmatpush1.msra.mxu0 %v143
    %172 = vmatprep.subr.mxu0 0.0
    %173 = vmatpush1.msra.mxu0 %v144
    %174 = vmatprep.subr.mxu0 0.0
    %175 = vmatpush1.msra.mxu0 %v145
    %176 = vmatprep.subr.mxu0 0.0
    %177 = vmatpush1.msra.mxu0 %v146
    %178 = vmatprep.subr.mxu0 0.0
    %179 = vmatpush1.msra.mxu0 %v147
    %180 = vmatprep.subr.mxu0 0.0
    %181 = vmatpush1.msra.mxu0 %v148
    %182 = vmatprep.subr.mxu0 0.0
    %183 = vmatpush1.msra.mxu0 %v149
    %184 = vmatprep.subr.mxu0 0.0
    %185 = vmatpush1.msra.mxu0 %v150
    %186 = vmatprep.subr.mxu0 0.0
    %187 = vmatpush1.msra.mxu0 %v151
    %188 = vmatprep.subr.mxu0 0.0
    %189 = vmatpush1.msra.mxu0 %v152
    %190 = vmatprep.subr.mxu0 0.0
    %191 = vmatpush1.msra.mxu0 %v153
    %192 = vmatprep.subr.mxu0 0.0
    %193 = vmatpush1.msra.mxu0 %v154
    %194 = vmatprep.subr.mxu0 0.0
    %195 = vmatpush1.msra.mxu0 0.0
    %196 = vmatprep.subr.mxu0 0.0
    %197 = vmatpush1.msra.mxu0 0.0
    %198 = vmatprep.subr.mxu0 0.0
    %199 = vmatpush1.msra.mxu0 0.0
    %200 = vmatprep.subr.mxu0 0.0
    %201 = vmatpush1.msra.mxu0 0.0
    %202 = vmatprep.subr.mxu0 0.0
    %203 = vmatpush1.msra.mxu0 0.0
    %204 = vmatprep.subr.mxu0 0.0
    %205 = vmatpush1.msra.mxu0 0.0
    %206 = vmatprep.subr.mxu0 0.0
    %207 = vmatpush1.msra.mxu0 0.0
    %208 = vmatprep.subr.mxu0 0.0
    %209 = vmatpush1.msra.mxu0 0.0
    %210 = vmatprep.subr.mxu0 0.0
    %211 = vmatpush1.msra.mxu0 0.0
    %212 = vmatprep.subr.mxu0 0.0
    %213 = vmatpush1.msra.mxu0 0.0
    %214 = vmatprep.subr.mxu0 0.0
    %215 = vmatpush1.msra.mxu0 0.0
    %216 = vmatprep.subr.mxu0 0.0
    %217 = vmatpush1.msra.mxu0 0.0
    %218 = vmatprep.subr.mxu0 0.0
    %219 = vmatpush1.msra.mxu0 0.0
    %220 = vmatprep.subr.mxu0 0.0
    %221 = vmatpush1.msra.mxu0 0.0
    %222 = vmatprep.subr.mxu0 0.0
    %223 = vmatpush1.msra.mxu0 0.0
    %224 = vmatprep.subr.mxu0 0.0
    %225 = vmatpush1.msra.mxu0 0.0
    %226 = vmatprep.mubr.f32.mxu0 0.0
    %227 = vmatmul.mubr.f32.gmra.mrb[0].mxu0 %v138
    %v228 = vpop.f32.mrb[0].mxu0
    %v229 = vadd.f32 %v160, %v228
    %v230 = vpop.f32.mrb[0].mxu0
    %231 = vdwg.mxu0
    %vm232 = vcmp.gt.f32.partialorder %v229, 0.0
    %v233 = vmul.f32 %v229, 0.2
    %v234 = vsel %vm232, %v229, %v233
    %v235 = vld [vmem:[%s5] sm:$0xff]
    %v236 = vld [vmem:[%s5 + $0x8] sm:$0xff]
    %v237 = vld [vmem:[%s5 + $0x10] sm:$0xff]
    %v238 = vld [vmem:[%s5 + $0x18] sm:$0xff]
    %v239 = vld [vmem:[%s5 + $0x20] sm:$0xff]
    %v240 = vld [vmem:[%s5 + $0x28] sm:$0xff]
    %v241 = vld [vmem:[%s5 + $0x30] sm:$0xff]
    %v242 = vld [vmem:[%s5 + $0x38] sm:$0xff]
    %v243 = vld [vmem:[%s5 + $0x40] sm:$0xff]
    %v244 = vld [vmem:[%s5 + $0x48] sm:$0xff]
    %v245 = vld [vmem:[%s5 + $0x50] sm:$0xff]
    %v246 = vld [vmem:[%s5 + $0x58] sm:$0xff]
    %v247 = vld [vmem:[%s5 + $0x60] sm:$0xff]
    %v248 = vld [vmem:[%s5 + $0x68] sm:$0xff]
    %v249 = vld [vmem:[%s5 + $0x70] sm:$0xff]
    %v250 = vld [vmem:[%s5 + $0x78] sm:$0xff]
    %v251 = vld [vmem:[#allocation2] sm:$0x1]
    %v253 = vlaneseq
    %v254 = vshrl.u32 %v253, 7
    %v255 = vsub.s32 0, %v254
    %v256 = vrot.slane %v251, %v255
    %258 = vmatprep.subr.mxu0 0.0
    %259 = vmatpush1.msra.mxu0 %v235
    %260 = vmatprep.subr.mxu0 0.0
    %261 = vmatpush1.msra.mxu0 %v236
    %262 = vmatprep.subr.mxu0 0.0
    %263 = vmatpush1.msra.mxu0 %v237
    %264 = vmatprep.subr.mxu0 0.0
    %265 = vmatpush1.msra.mxu0 %v238
    %266 = vmatprep.subr.mxu0 0.0
    %267 = vmatpush1.msra.mxu0 %v239
    %268 = vmatprep.subr.mxu0 0.0
    %269 = vmatpush1.msra.mxu0 %v240
    %270 = vmatprep.subr.mxu0 0.0
    %271 = vmatpush1.msra.mxu0 %v241
    %272 = vmatprep.subr.mxu0 0.0
    %273 = vmatpush1.msra.mxu0 %v242
    %274 = vmatprep.subr.mxu0 0.0
    %275 = vmatpush1.msra.mxu0 %v243
    %276 = vmatprep.subr.mxu0 0.0
    %277 = vmatpush1.msra.mxu0 %v244
    %278 = vmatprep.subr.mxu0 0.0
    %279 = vmatpush1.msra.mxu0 %v245
    %280 = vmatprep.subr.mxu0 0.0
    %281 = vmatpush1.msra.mxu0 %v246
    %282 = vmatprep.subr.mxu0 0.0
    %283 = vmatpush1.msra.mxu0 %v247
    %284 = vmatprep.subr.mxu0 0.0
    %285 = vmatpush1.msra.mxu0 %v248
    %286 = vmatprep.subr.mxu0 0.0
    %287 = vmatpush1.msra.mxu0 %v249
    %288 = vmatprep.subr.mxu0 0.0
    %289 = vmatpush1.msra.mxu0 %v250
    %290 = vmatprep.subr.mxu0 0.0
    %291 = vmatpush1.msra.mxu0 0.0
    %292 = vmatprep.subr.mxu0 0.0
    %293 = vmatpush1.msra.mxu0 0.0
    %294 = vmatprep.subr.mxu0 0.0
    %295 = vmatpush1.msra.mxu0 0.0
    %296 = vmatprep.subr.mxu0 0.0
    %297 = vmatpush1.msra.mxu0 0.0
    %298 = vmatprep.subr.mxu0 0.0
    %299 = vmatpush1.msra.mxu0 0.0
    %300 = vmatprep.subr.mxu0 0.0
    %301 = vmatpush1.msra.mxu0 0.0
    %302 = vmatprep.subr.mxu0 0.0
    %303 = vmatpush1.msra.mxu0 0.0
    %304 = vmatprep.subr.mxu0 0.0
    %305 = vmatpush1.msra.mxu0 0.0
    %306 = vmatprep.subr.mxu0 0.0
    %307 = vmatpush1.msra.mxu0 0.0
    %308 = vmatprep.subr.mxu0 0.0
    %309 = vmatpush1.msra.mxu0 0.0
    %310 = vmatprep.subr.mxu0 0.0
    %311 = vmatpush1.msra.mxu0 0.0
    %312 = vmatprep.subr.mxu0 0.0
    %313 = vmatpush1.msra.mxu0 0.0
    %314 = vmatprep.subr.mxu0 0.0
    %315 = vmatpush1.msra.mxu0 0.0
    %316 = vmatprep.subr.mxu0 0.0
    %317 = vmatpush1.msra.mxu0 0.0
    %318 = vmatprep.subr.mxu0 0.0
    %319 = vmatpush1.msra.mxu0 0.0
    %320 = vmatprep.subr.mxu0 0.0
    %321 = vmatpush1.msra.mxu0 0.0
    %322 = vmatprep.mubr.f32.mxu0 0.0
    %323 = vmatmul.mubr.f32.gmra.mrb[0].mxu0 %v234
    %v324 = vpop.f32.mrb[0].mxu0
    %v325 = vadd.f32 %v256, %v324
    %v326 = vpop.f32.mrb[0].mxu0
    %327 = vdwg.mxu0
    %vm328 = vcmask 1024
    %329 = vst.msk [vmem:[%s7] sm:$0x3] %vm328, %v325
    // Predicated region
    $region38: #{tpu_custom_call.1} parent=1 // pred_check
      _
    $region39: #{tpu_custom_call.1} parent=1 // pred_check_branch
      %331 = sbr.rel (0) target = $region41
    $region40: #{tpu_custom_call.1} parent=1 // pred_region
      _
    $region41: #{tpu_custom_call.1} parent=1 // pred_fallthru
      _
    // Predicated region
    $region42: #{tpu_custom_call.1} parent=1 // pred_check
      _
    $region43: #{tpu_custom_call.1} parent=1 // pred_check_branch
      %333 = sbr.rel (0) target = $region45
    $region44: #{tpu_custom_call.1} parent=1 // pred_region
      _
    $region45: #{tpu_custom_call.1} parent=1 // pred_fallthru
      _
    %334 = vsyncpa [#allocation4], 1
    %335 = vsyncpa [#allocation6], 1

</llo_original>
